<compile_context>
chip_gen: v6e
topology: v6e:2x2x1
jax: 0.10.0
libtpu: 0.0.40
codegen_flags: <defaults>
</compile_context>

<pallas_src>
import jax
import jax.numpy as jnp
from jax.experimental import pallas as pl
from jax.experimental.pallas import tpu as pltpu


def _copy_kernel(x_ref, o_ref):
    # Pure pass-through: copy the current tile.
    # TODO(synk): a fused residual-add would do o_ref[...] = x_ref[...] + f_ref[...]
    o_ref[...] = x_ref[...]


def _sublane_multiple(itemsize: int) -> int:
    # Rows per packed (8, 128) tile: fp32 -> 8, bf16/fp16 -> 16, int8/fp8 -> 32.
    return 8 * max(1, 4 // itemsize)


def _tpu_config() -> dict:
    """Per-generation tiling config: tile target, VMEM limit, TensorCore count."""
    kind = ""
    try:
        kind = jax.devices()[0].device_kind.lower()
    except Exception:
        pass
    if "7" in kind:
        # v7x: ~3.2 TB/s HBM, 64 MiB VMEM/TC, 2 TCs/chip.
        # 6 MiB tile * 2 streams * 2 buffers = 24 MiB < 48 MiB limit.
        return dict(target_tile=6 * 1024 * 1024,
                    min_split_tile=2 * 1024 * 1024,
                    vmem_limit=48 * 1024 * 1024,
                    num_tc=2)
    # v5e / v6e (and conservative fallback): 1 TC/chip, 128 MiB physical VMEM.
    # 4 MiB tile * 2 streams * 2 buffers = 16 MiB < 64 MiB limit.
    return dict(target_tile=4 * 1024 * 1024,
                min_split_tile=1 * 1024 * 1024,
                vmem_limit=64 * 1024 * 1024,
                num_tc=1)


def _pick_lanes(total: int):
    """Largest candidate multiple of 128 that divides total (lane-dense slab)."""
    for cand in (4096, 2048, 1024, 512, 384, 256, 128):
        if total % cand == 0:
            return cand
    return None  # odd total -> caller uses a single full-extent block


def _pick_tile_rows(rows: int, row_bytes: int, itemsize: int, cfg: dict) -> int:
    sub = _sublane_multiple(itemsize)
    if rows <= sub:
        return rows  # single (full-extent) block; always legal
    # Largest multiple of `sub` whose tile is <= the generation's target bytes.
    target_rows = max(sub, (cfg["target_tile"] // max(row_bytes, 1)) // sub * sub)
    tile = min(rows, target_rows)
    if tile < rows:
        tile -= tile % sub
        tile = max(tile, sub)
    # Megacore split (v7x only): aim for >= 2 grid steps per TensorCore, but
    # never push a tile below ~2 MiB where the ~0.35us per-step cost dominates
    # the DMA time.  Single-TC chips (v5e/v6e) skip this entirely.
    if cfg["num_tc"] > 1:
        min_steps = 2 * cfg["num_tc"]
        while (pl.cdiv(rows, tile) < min_steps
               and tile > sub
               and (tile // 2) * row_bytes >= cfg["min_split_tile"]):
            tile = max(sub, (tile // 2) // sub * sub)
    return tile


def _residual_copy_pallas(x: jax.Array) -> jax.Array:
    """Tiled lane-dense HBM->VMEM->HBM copy (base for a fused residual-add)."""
    orig_shape = x.shape
    total = x.size
    itemsize = jnp.dtype(x.dtype).itemsize
    cfg = _tpu_config()

    lanes = _pick_lanes(total)
    if lanes is None:
        # Odd element count: one full-extent block (correct; rare fallback).
        rows, lanes, tile_rows = 1, total, 1
        x2d = x.reshape(rows, lanes)
    else:
        rows = total // lanes
        x2d = x.reshape(rows, lanes)
        tile_rows = _pick_tile_rows(rows, lanes * itemsize, itemsize, cfg)

    grid = (pl.cdiv(rows, tile_rows),)  # ragged last block handled by Pallas

    out2d = pl.pallas_call(
        _copy_kernel,
        out_shape=jax.ShapeDtypeStruct((rows, lanes), x.dtype),
        grid_spec=pltpu.PrefetchScalarGridSpec(
            num_scalar_prefetch=0,
            grid=grid,
            in_specs=[pl.BlockSpec((tile_rows, lanes), lambda i: (i, 0))],
            out_specs=pl.BlockSpec((tile_rows, lanes), lambda i: (i, 0)),
        ),
        compiler_params=pltpu.CompilerParams(
            dimension_semantics=("parallel",),
            vmem_limit_bytes=cfg["vmem_limit"],
        ),
        cost_estimate=pl.CostEstimate(
            flops=0,
            transcendentals=0,
            bytes_accessed=2 * total * itemsize,
        ),
    )(x2d)

    return out2d.reshape(orig_shape)


def residual_block_forward(x: jax.Array, *, force_kernel: bool = False) -> jax.Array:
    """ResidualBlock.forward == nn.Identity()(x).

    Default path returns x directly (zero HBM traffic — the literal identity
    needs no kernel).  force_kernel=True runs the tiled copy kernel, kept as
    the skeleton for a fused residual-add (o = x + f(x)).
    """
    if not force_kernel:
        return x
    return _residual_copy_pallas(x)


if __name__ == "__main__":
    key = jax.random.PRNGKey(0)
    # Small NCHW input consistent with a conv-style residual block.
    x = jax.random.normal(key, (2, 4, 16, 16), dtype=jnp.float32)

    # Fast path: literal identity (no kernel).
    y_fast = residual_block_forward(x)
    assert y_fast.shape == x.shape and y_fast.dtype == x.dtype

    # Kernel path: exercise the Pallas copy kernel once.
    y = residual_block_forward(x, force_kernel=True)
    y = jax.block_until_ready(y)

    assert y.shape == x.shape and y.dtype == x.dtype
    assert bool(jnp.array_equal(y, x))
    print("KERNEL_OK")
</pallas_src>

<mosaic_0001>
module attributes {stable_mosaic.version = 11 : i64} {
  func.func @_copy_kernel(%arg0: i32, %arg1: memref<1x2048xf32, #tpu.memory_space<vmem>>, %arg2: memref<1x2048xf32, #tpu.memory_space<vmem>>) attributes {dimension_semantics = [#tpu.dimension_semantics<parallel>], iteration_bounds = array<i64: 1>, scalar_prefetch = 0 : i64, scratch_operands = 0 : i64, tpu.core_type = #tpu.core_type<tc>, window_params = [{transform_indices = @transform_0, window_bounds = array<i64: 1, 2048>}, {transform_indices = @transform_1, window_bounds = array<i64: 1, 2048>}]} {
    %c0 = arith.constant 0 : index
    %c0_0 = arith.constant 0 : index
    %0 = vector.load %arg1[%c0, %c0_0] : memref<1x2048xf32, #tpu.memory_space<vmem>>, vector<1x2048xf32>
    %c0_1 = arith.constant 0 : index
    %c0_2 = arith.constant 0 : index
    %1 = vector.load %arg2[%c0_1, %c0_2] : memref<1x2048xf32, #tpu.memory_space<vmem>>, vector<1x2048xf32>
    tpu.vector_store %arg2[%c0_1, %c0_2], %0 {strides = array<i32>} : memref<1x2048xf32, #tpu.memory_space<vmem>>, vector<1x2048xf32>,
    return
  }
  func.func @transform_0(%arg0: i32) -> (i32, i32) {
    %c0_i32 = arith.constant 0 : i32
    %c0_i32_0 = arith.constant 0 : i32
    return %arg0, %c0_i32 : i32, i32
  }
  func.func @transform_1(%arg0: i32) -> (i32, i32) {
    %c0_i32 = arith.constant 0 : i32
    %c0_i32_0 = arith.constant 0 : i32
    return %arg0, %c0_i32 : i32, i32
  }
}

</mosaic_0001>

<llo_original>
// kernel: tpu_custom_call.1
$region0: #{tpu_custom_call.1}
  #allocation0 [shape = 'u32[]', space=smem, size = 0x4, offset = 0x4, fixed_abs, tag = 'smem constant byte address 0x4 - core index']
  #allocation1 [shape = 'u32[144,128]{1,0:T(1,128)}', space=vmem, size = 0x12000, scoped, tag = 'internal scratch']
  %s0 = inlined_call_operand.hbm [shape: f32[1,2048], index: 0, kind: input, shape index: {}]
  %s1 = inlined_call_operand.hbm [shape: f32[1,2048], index: 1, kind: output, shape index: {}]
  %s2 = sld [smem:[#allocation0]]
  $region18: #{tpu_custom_call.1} parent=0
    _
  %s4 = ssub.s32 1, %s2
  %s5 = scalar_select 0, %s4, %s2
  $region1: #{tpu_custom_call.1} parent=0
    #allocation2 [shape = 'u8[8192]{0}', space=vmem, size = 0x2000, scoped, tag = 'input window, operand 0, single buffered']
    #allocation3 [shape = 's32[1]{0}', space=sflag, size = 0x4, scoped, tag = 'scoped memory for tpu_custom_call.1']
    #allocation4 [shape = 's32[1]{0}', space=sflag, size = 0x4, scoped, tag = 'scoped memory for tpu_custom_call.1']
    #allocation5 [shape = 'u8[8192]{0}', space=vmem, size = 0x2000, scoped, tag = 'output window, operand 0, single buffered']
    %6 = vsyncpa [#allocation3], 0
    %7 = vsyncpa [#allocation4], 0
    // Predicated region
    $region2: #{tpu_custom_call.1} parent=1 // pred_check
      _
    $region3: #{tpu_custom_call.1} parent=1 // pred_check_branch
      %9 = sbr.rel (0) target = $region5
    $region4: #{tpu_custom_call.1} parent=1 // pred_region
      %s11 = ssub.s32 256, 256
      %12 = vsyncadd [#allocation3], %s11
      %s14 = sshll.u32 [#allocation2], 4
      %s15 = int_to_ptr.vmem [resolvable:$true] %s14
      %17 = dma.hbm_to_vmem [thread:$0]  %s0, 256, %s15, [#allocation3]
    $region5: #{tpu_custom_call.1} parent=1 // pred_fallthru
      _
    // Predicated region
    $region6: #{tpu_custom_call.1} parent=1 // pred_check
      _
    $region7: #{tpu_custom_call.1} parent=1 // pred_check_branch
      %19 = sbr.rel (0) target = $region9
    $region8: #{tpu_custom_call.1} parent=1 // pred_region
      %20 = dma.done [#allocation3], 256
    $region9: #{tpu_custom_call.1} parent=1 // pred_fallthru
      _
    %v21 = vld [vmem:[#allocation2] sm:$0xff]
    %v22 = vld [vmem:[#allocation2 + $0x8] sm:$0xff]
    %23 = vst [vmem:[#allocation5] sm:$0xff] %v21
    %24 = vst [vmem:[#allocation5 + $0x8] sm:$0xff] %v22
    // Predicated region
    $region10: #{tpu_custom_call.1} parent=1 // pred_check
      _
    $region11: #{tpu_custom_call.1} parent=1 // pred_check_branch
      %26 = sbr.rel (0) target = $region13
    $region12: #{tpu_custom_call.1} parent=1 // pred_region
      %s28 = ssub.s32 256, 256
      %29 = vsyncadd [#allocation4], %s28
      %s31 = sshll.u32 [#allocation5], 4
      %s32 = int_to_ptr.vmem [resolvable:$true] %s31
      %34 = dma.vmem_to_hbm [thread:$0]  %s32, 256, %s1, [#allocation4]
    $region13: #{tpu_custom_call.1} parent=1 // pred_fallthru
      _
    // Predicated region
    $region14: #{tpu_custom_call.1} parent=1 // pred_check
      _
    $region15: #{tpu_custom_call.1} parent=1 // pred_check_branch
      %36 = sbr.rel (0) target = $region17
    $region16: #{tpu_custom_call.1} parent=1 // pred_region
      %37 = dma.done [#allocation4], 256
    $region17: #{tpu_custom_call.1} parent=1 // pred_fallthru
      _
    %38 = vsyncpa [#allocation3], 1
    %39 = vsyncpa [#allocation4], 1

</llo_original>
